<compile_context>
chip_gen: v6e
topology: v6e:2x2x1
jax: 0.10.0
libtpu: 0.0.40
codegen_flags: <defaults>
</compile_context>

<pallas_src>
import jax
import jax.numpy as jnp
from jax.experimental import pallas as pl
from jax.experimental.pallas import tpu as pltpu


def discriminator_kernel(x_ref, w1_ref, b1_ref, w2_ref, b2_ref, w3_ref, y_ref):
    # Layer 1: MXU matmul (bf16 or f32 operands), f32 accumulation + bias + ReLU.
    h = jnp.dot(x_ref[...], w1_ref[...], preferred_element_type=jnp.float32)
    h = jnp.maximum(h + b1_ref[...], 0.0)
    # Layer 2: cast the f32 activation back to the MXU operand dtype.
    h = jnp.dot(h.astype(w2_ref.dtype), w2_ref[...],
                preferred_element_type=jnp.float32)
    h = jnp.maximum(h + b2_ref[...], 0.0)
    # Output layer (h2 -> 1): elementwise multiply (VPU) + transpose / sublane
    # reduce (XLU) instead of an N=1 MXU matmul; result is lane-dense
    # [1, tile_b] with batch on lanes.  (bf16 -> f32 cast of w3 is exact.)
    hw = h * w3_ref[...].astype(jnp.float32)        # [tile_b, h2] * [1, h2]
    y = jnp.sum(hw.T, axis=0, keepdims=True)        # [1, tile_b]
    y_ref[...] = y.astype(y_ref.dtype)


def discriminator_forward(x, params, *, tile_b=512, compute_dtype=jnp.bfloat16):
    """x: [B, in_feature] float32; params: (w1, b1, w2, b2, w3, b3).

    Weights are stored [in, out]; biases [1, out] (b3 is [1, 1]).
    compute_dtype is the MXU-operand dtype (bf16 default); accumulation,
    biases and ReLU stay float32 inside the kernel.
    """
    w1, b1, w2, b2, w3, b3 = params
    B, F = x.shape
    h1 = w1.shape[1]
    h2 = w2.shape[1]

    # MXU operand casts (cheap, at the call boundary); biases stay f32.
    x_c = x.astype(compute_dtype)
    w1_c = w1.astype(compute_dtype)
    w2_c = w2.astype(compute_dtype)
    w3_row = w3.T.astype(compute_dtype)          # [1, h2] broadcast row
    b1_r = b1.astype(jnp.float32)
    b2_r = b2.astype(jnp.float32)

    if B <= tile_b:
        # Small-batch path: one tile whose blocks equal the full array dims
        # (no batch padding; a single masked store is negligible).
        tb = B
        num_tiles = 1
    else:
        # Multi-tile path: tile_b must be a multiple of 128 so the lane-dense
        # output blocks are unmasked; the ragged last block (if any) is handled
        # by Pallas partial-block masking — no jnp.pad HBM copy of x.
        assert tile_b % 128 == 0, "tile_b must be a multiple of 128"
        tb = tile_b
        num_tiles = pl.cdiv(B, tb)

    itemsize = jnp.dtype(compute_dtype).itemsize
    flops = 2 * B * (F * h1 + h1 * h2 + h2)
    bytes_accessed = (itemsize * (B * F + F * h1 + h1 * h2 + h2)
                      + 4 * (h1 + h2 + B))

    # Explicit VMEM budget: double-buffered x tile + out tile + (double-buffered)
    # resident weights/biases; keep at least the 32 MiB scoped default, cap at
    # the 64 MiB physical VMEM of v7x.
    vmem_est = (2 * (tb * F + F * h1 + h1 * h2 + h2) * itemsize
                + 2 * (h1 + h2 + tb) * 4)
    vmem_limit = int(min(max(2 * vmem_est, 32 * 1024 * 1024), 64 * 1024 * 1024))

    y_row = pl.pallas_call(
        discriminator_kernel,
        out_shape=jax.ShapeDtypeStruct((1, B), jnp.float32),
        grid=(num_tiles,),
        in_specs=[
            pl.BlockSpec((tb, F), lambda i: (i, 0)),    # x: pipelined batch tile
            pl.BlockSpec((F, h1), lambda i: (0, 0)),    # w1 (VMEM resident)
            pl.BlockSpec((1, h1), lambda i: (0, 0)),    # b1
            pl.BlockSpec((h1, h2), lambda i: (0, 0)),   # w2
            pl.BlockSpec((1, h2), lambda i: (0, 0)),    # b2
            pl.BlockSpec((1, h2), lambda i: (0, 0)),    # w3 (as a row)
        ],
        out_specs=pl.BlockSpec((1, tb), lambda i: (0, i)),   # lane-dense output
        compiler_params=pltpu.CompilerParams(
            dimension_semantics=("parallel",),
            vmem_limit_bytes=vmem_limit),
        cost_estimate=pl.CostEstimate(flops=flops, transcendentals=0,
                                      bytes_accessed=bytes_accessed),
    )(x_c, w1_c, b1_r, w2_c, b2_r, w3_row)

    # Wrapper-side layout plumbing + scalar output bias (dropped from kernel).
    return y_row[0, :].reshape(B, 1) + b3.astype(jnp.float32)


def init_params(key, in_feature, hidden_units_size):
    """Deterministic synthetic init. Weights stored as [in, out]."""
    dims = [in_feature] + hidden_units_size + [1]
    params = []
    for i in range(len(dims) - 1):
        key, kw, kb = jax.random.split(key, 3)
        fan_in = dims[i]
        bound = 1.0 / jnp.sqrt(fan_in)
        w = jax.random.uniform(kw, (dims[i], dims[i + 1]),
                               minval=-bound, maxval=bound, dtype=jnp.float32)
        b = jax.random.uniform(kb, (1, dims[i + 1]),
                               minval=-bound, maxval=bound, dtype=jnp.float32)
        params += [w, b]
    return tuple(params)


def reference_forward(x, params):
    """Pure-f32 reference (matches the PyTorch eval-mode forward)."""
    w1, b1, w2, b2, w3, b3 = params
    h = jnp.maximum(x @ w1 + b1, 0.0)
    h = jnp.maximum(h @ w2 + b2, 0.0)
    return h @ w3 + b3


def reference_forward_mixed(x, params, compute_dtype):
    """Reference that mirrors the kernel's mixed-precision dataflow exactly."""
    w1, b1, w2, b2, w3, b3 = params
    cd = compute_dtype
    h = jnp.dot(x.astype(cd), w1.astype(cd), preferred_element_type=jnp.float32)
    h = jnp.maximum(h + b1, 0.0)
    h = jnp.dot(h.astype(cd), w2.astype(cd), preferred_element_type=jnp.float32)
    h = jnp.maximum(h + b2, 0.0)
    y = jnp.sum(h * w3.T.astype(cd).astype(jnp.float32), axis=-1, keepdims=True)
    return y + b3


if __name__ == "__main__":
    B = 8
    in_feature = 32
    hidden_units_size = [32, 32]

    key = jax.random.PRNGKey(0)
    kx, kp, kx2 = jax.random.split(key, 3)
    x = jax.random.normal(kx, (B, in_feature), dtype=jnp.float32)
    params = init_params(kp, in_feature, hidden_units_size)

    # 1) Exact f32 path (small-batch single-tile branch).
    y_f32 = discriminator_forward(x, params, compute_dtype=jnp.float32)
    jax.block_until_ready(y_f32)
    y_ref = reference_forward(x, params)
    assert y_f32.shape == (B, 1)
    assert jnp.allclose(y_f32, y_ref, atol=1e-5, rtol=1e-5)

    # 2) Default bf16-MXU-operand path, checked against a matching mixed-
    #    precision reference (f32 accumulation on both sides).
    y_bf16 = discriminator_forward(x, params)
    jax.block_until_ready(y_bf16)
    y_ref_mixed = reference_forward_mixed(x, params, jnp.bfloat16)
    assert jnp.allclose(y_bf16, y_ref_mixed, atol=1e-4, rtol=1e-4)

    # 3) Multi-tile no-pad path with a ragged tail (partial last block masked).
    B2 = 300
    x2 = jax.random.normal(kx2, (B2, in_feature), dtype=jnp.float32)
    y2 = discriminator_forward(x2, params, tile_b=128)
    jax.block_until_ready(y2)
    y2_ref = reference_forward_mixed(x2, params, jnp.bfloat16)
    assert y2.shape == (B2, 1)
    assert jnp.allclose(y2, y2_ref, atol=1e-4, rtol=1e-4)

    print("KERNEL_OK")
</pallas_src>

<mosaic_0001>
module attributes {stable_mosaic.version = 11 : i64} {
  func.func @discriminator_kernel(%arg0: i32, %arg1: memref<8x32xf32, #tpu.memory_space<vmem>>, %arg2: memref<32x32xf32, #tpu.memory_space<vmem>>, %arg3: memref<1x32xf32, #tpu.memory_space<vmem>>, %arg4: memref<32x32xf32, #tpu.memory_space<vmem>>, %arg5: memref<1x32xf32, #tpu.memory_space<vmem>>, %arg6: memref<1x32xf32, #tpu.memory_space<vmem>>, %arg7: memref<1x8xf32, #tpu.memory_space<vmem>>) attributes {dimension_semantics = [#tpu.dimension_semantics<parallel>], iteration_bounds = array<i64: 1>, scalar_prefetch = 0 : i64, scratch_operands = 0 : i64, tpu.core_type = #tpu.core_type<tc>, window_params = [{transform_indices = @transform_0, window_bounds = array<i64: 8, 32>}, {pipeline_mode = #tpu.pipeline_mode<synchronous>, transform_indices = @transform_1, window_bounds = array<i64: 32, 32>}, {pipeline_mode = #tpu.pipeline_mode<synchronous>, transform_indices = @transform_2, window_bounds = array<i64: 1, 32>}, {pipeline_mode = #tpu.pipeline_mode<synchronous>, transform_indices = @transform_3, window_bounds = array<i64: 32, 32>}, {pipeline_mode = #tpu.pipeline_mode<synchronous>, transform_indices = @transform_4, window_bounds = array<i64: 1, 32>}, {pipeline_mode = #tpu.pipeline_mode<synchronous>, transform_indices = @transform_5, window_bounds = array<i64: 1, 32>}, {transform_indices = @transform_6, window_bounds = array<i64: 1, 8>}]} {
    %c0 = arith.constant 0 : index
    %c0_0 = arith.constant 0 : index
    %0 = vector.load %arg1[%c0, %c0_0] : memref<8x32xf32, #tpu.memory_space<vmem>>, vector<8x32xf32>
    %c0_1 = arith.constant 0 : index
    %c0_2 = arith.constant 0 : index
    %1 = vector.load %arg2[%c0_1, %c0_2] : memref<32x32xf32, #tpu.memory_space<vmem>>, vector<32x32xf32>
    %cst = arith.constant dense<0.000000e+00> : vector<8x32xf32>
    %2 = tpu.matmul %0, %1, %cst {dimension_numbers = #tpu.dot_dimension_numbers<[1], [0], [0], [1], [0, 0, 1, 1], [], []>} : vector<8x32xf32>, vector<32x32xf32>, vector<8x32xf32> -> vector<8x32xf32>
    %c0_3 = arith.constant 0 : index
    %c0_4 = arith.constant 0 : index
    %3 = vector.load %arg3[%c0_3, %c0_4] : memref<1x32xf32, #tpu.memory_space<vmem>>, vector<1x32xf32>
    %4 = vector.broadcast %3 : vector<1x32xf32> to vector<8x32xf32>
    %5 = arith.addf %2, %4 : vector<8x32xf32>
    %cst_5 = arith.constant 0.000000e+00 : f32
    %6 = vector.broadcast %cst_5 : f32 to vector<8x32xf32>
    %7 = arith.maximumf %5, %6 : vector<8x32xf32>
    %c0_6 = arith.constant 0 : index
    %c0_7 = arith.constant 0 : index
    %8 = vector.load %arg4[%c0_6, %c0_7] : memref<32x32xf32, #tpu.memory_space<vmem>>, vector<32x32xf32>
    %cst_8 = arith.constant dense<0.000000e+00> : vector<8x32xf32>
    %9 = tpu.matmul %7, %8, %cst_8 {dimension_numbers = #tpu.dot_dimension_numbers<[1], [0], [0], [1], [0, 0, 1, 1], [], []>} : vector<8x32xf32>, vector<32x32xf32>, vector<8x32xf32> -> vector<8x32xf32>
    %c0_9 = arith.constant 0 : index
    %c0_10 = arith.constant 0 : index
    %10 = vector.load %arg5[%c0_9, %c0_10] : memref<1x32xf32, #tpu.memory_space<vmem>>, vector<1x32xf32>
    %11 = vector.broadcast %10 : vector<1x32xf32> to vector<8x32xf32>
    %12 = arith.addf %9, %11 : vector<8x32xf32>
    %cst_11 = arith.constant 0.000000e+00 : f32
    %13 = vector.broadcast %cst_11 : f32 to vector<8x32xf32>
    %14 = arith.maximumf %12, %13 : vector<8x32xf32>
    %c0_12 = arith.constant 0 : index
    %c0_13 = arith.constant 0 : index
    %15 = vector.load %arg6[%c0_12, %c0_13] : memref<1x32xf32, #tpu.memory_space<vmem>>, vector<1x32xf32>
    %16 = vector.broadcast %15 : vector<1x32xf32> to vector<8x32xf32>
    %17 = arith.mulf %14, %16 : vector<8x32xf32>
    %18 = tpu.transpose %17, [1, 0] : vector<8x32xf32> -> vector<32x8xf32>
    %cst_14 = arith.constant dense<0.000000e+00> : vector<8xf32>
    %19 = vector.multi_reduction <add>, %18, %cst_14 [0] : vector<32x8xf32> to vector<8xf32>
    %20 = vector.shape_cast %19 : vector<8xf32> to vector<1x8xf32>
    %c0_15 = arith.constant 0 : index
    %c0_16 = arith.constant 0 : index
    %21 = vector.load %arg7[%c0_15, %c0_16] : memref<1x8xf32, #tpu.memory_space<vmem>>, vector<1x8xf32>
    tpu.vector_store %arg7[%c0_15, %c0_16], %20 {strides = array<i32>} : memref<1x8xf32, #tpu.memory_space<vmem>>, vector<1x8xf32>,
    return
  }
  func.func @transform_0(%arg0: i32) -> (i32, i32) {
    %c0_i32 = arith.constant 0 : i32
    %c0_i32_0 = arith.constant 0 : i32
    return %arg0, %c0_i32 : i32, i32
  }
  func.func @transform_1(%arg0: i32) -> (i32, i32) {
    %c0_i32 = arith.constant 0 : i32
    %c0_i32_0 = arith.constant 0 : i32
    %c0_i32_1 = arith.constant 0 : i32
    return %c0_i32, %c0_i32_0 : i32, i32
  }
  func.func @transform_2(%arg0: i32) -> (i32, i32) {
    %c0_i32 = arith.constant 0 : i32
    %c0_i32_0 = arith.constant 0 : i32
    %c0_i32_1 = arith.constant 0 : i32
    return %c0_i32, %c0_i32_0 : i32, i32
  }
  func.func @transform_3(%arg0: i32) -> (i32, i32) {
    %c0_i32 = arith.constant 0 : i32
    %c0_i32_0 = arith.constant 0 : i32
    %c0_i32_1 = arith.constant 0 : i32
    return %c0_i32, %c0_i32_0 : i32, i32
  }
  func.func @transform_4(%arg0: i32) -> (i32, i32) {
    %c0_i32 = arith.constant 0 : i32
    %c0_i32_0 = arith.constant 0 : i32
    %c0_i32_1 = arith.constant 0 : i32
    return %c0_i32, %c0_i32_0 : i32, i32
  }
  func.func @transform_5(%arg0: i32) -> (i32, i32) {
    %c0_i32 = arith.constant 0 : i32
    %c0_i32_0 = arith.constant 0 : i32
    %c0_i32_1 = arith.constant 0 : i32
    return %c0_i32, %c0_i32_0 : i32, i32
  }
  func.func @transform_6(%arg0: i32) -> (i32, i32) {
    %c0_i32 = arith.constant 0 : i32
    %c0_i32_0 = arith.constant 0 : i32
    return %c0_i32, %arg0 : i32, i32
  }
}

</mosaic_0001>

<llo_original>
// kernel: tpu_custom_call.1
$region0: #{tpu_custom_call.1}
  #allocation0 [shape = 'u32[]', space=smem, size = 0x4, offset = 0x4, fixed_abs, tag = 'smem constant byte address 0x4 - core index']
  #allocation1 [shape = 'u32[144,128]{1,0:T(1,128)}', space=vmem, size = 0x12000, scoped, tag = 'internal scratch']
  %s0 = inlined_call_operand.hbm [shape: f32[8,32], index: 0, kind: input, shape index: {}]
  %s1 = inlined_call_operand.hbm [shape: f32[32,32], index: 1, kind: input, shape index: {}]
  %s2 = inlined_call_operand.vmem [shape: f32[1,32], index: 2, kind: input, shape index: {}]
  %s3 = inlined_call_operand.hbm [shape: f32[32,32], index: 3, kind: input, shape index: {}]
  %s4 = inlined_call_operand.vmem [shape: f32[1,32], index: 4, kind: input, shape index: {}]
  %s5 = inlined_call_operand.vmem [shape: f32[1,32], index: 5, kind: input, shape index: {}]
  %s6 = inlined_call_operand.hbm [shape: f32[1,8], index: 6, kind: output, shape index: {}]
  %s7 = sld [smem:[#allocation0]]
  $region46: #{tpu_custom_call.1} parent=0
    _
  %s9 = ssub.s32 1, %s7
  %s10 = scalar_select 0, %s9, %s7
  $region1: #{tpu_custom_call.1} parent=0
    #allocation2 [shape = 'u8[4096]{0}', space=vmem, size = 0x1000, scoped, tag = 'input window, operand 0, single buffered']
    #allocation3 [shape = 's32[1]{0}', space=sflag, size = 0x4, scoped, tag = 'scoped memory for tpu_custom_call.1']
    #allocation4 [shape = 's32[1]{0}', space=sflag, size = 0x4, scoped, tag = 'scoped memory for tpu_custom_call.1']
    #allocation5 [shape = 'u8[16384]{0}', space=vmem, size = 0x4000, scoped, tag = 'input window, operand 1, single buffered']
    #allocation6 [shape = 's32[1]{0}', space=sflag, size = 0x4, scoped, tag = 'scoped memory for tpu_custom_call.1']
    #allocation7 [shape = 'u8[16384]{0}', space=vmem, size = 0x4000, scoped, tag = 'input window, operand 3, single buffered']
    #allocation8 [shape = 'u8[512]{0}', space=vmem, size = 0x400, scoped, tag = 'output window, operand 0, single buffered']
    %11 = vsyncpa [#allocation3], 0
    %12 = vsyncpa [#allocation6], 0
    %13 = vsyncpa [#allocation4], 0
    // Predicated region
    $region2: #{tpu_custom_call.1} parent=1 // pred_check
      _
    $region3: #{tpu_custom_call.1} parent=1 // pred_check_branch
      %15 = sbr.rel (0) target = $region5
    $region4: #{tpu_custom_call.1} parent=1 // pred_region
      %s17 = ssub.s32 128, 128
      %18 = vsyncadd [#allocation3], %s17
      %s20 = sshll.u32 [#allocation2], 4
      %s21 = int_to_ptr.vmem [resolvable:$true] %s20
      %23 = dma.hbm_to_vmem [thread:$0]  %s0, 128, %s21, [#allocation3]
    $region5: #{tpu_custom_call.1} parent=1 // pred_fallthru
      _
    // Predicated region
    $region6: #{tpu_custom_call.1} parent=1 // pred_check
      _
    $region7: #{tpu_custom_call.1} parent=1 // pred_check_branch
      %25 = sbr.rel (0) target = $region9
    $region8: #{tpu_custom_call.1} parent=1 // pred_region
      %s27 = ssub.s32 512, 512
      %28 = vsyncadd [#allocation6], %s27
      %s29 = sshll.u32 [#allocation5], 4
      %s30 = int_to_ptr.vmem [resolvable:$true] %s29
      %35 = dma.hbm_to_vmem [thread:$0]  %s1, 512, %s30, [#allocation6], 128, 128, 8
    $region9: #{tpu_custom_call.1} parent=1 // pred_fallthru
      _
    // Predicated region
    $region10: #{tpu_custom_call.1} parent=1 // pred_check
      _
    $region11: #{tpu_custom_call.1} parent=1 // pred_check_branch
      %37 = sbr.rel (0) target = $region13
    $region12: #{tpu_custom_call.1} parent=1 // pred_region
      _
    $region13: #{tpu_custom_call.1} parent=1 // pred_fallthru
      _
    // Predicated region
    $region14: #{tpu_custom_call.1} parent=1 // pred_check
      _
    $region15: #{tpu_custom_call.1} parent=1 // pred_check_branch
      %39 = sbr.rel (0) target = $region17
    $region16: #{tpu_custom_call.1} parent=1 // pred_region
      %s41 = ssub.s32 512, 512
      %42 = vsyncadd [#allocation6], %s41
      %s43 = sshll.u32 [#allocation7], 4
      %s44 = int_to_ptr.vmem [resolvable:$true] %s43
      %49 = dma.hbm_to_vmem [thread:$0]  %s3, 512, %s44, [#allocation6], 128, 128, 8
    $region17: #{tpu_custom_call.1} parent=1 // pred_fallthru
      _
    // Predicated region
    $region18: #{tpu_custom_call.1} parent=1 // pred_check
      _
    $region19: #{tpu_custom_call.1} parent=1 // pred_check_branch
      %51 = sbr.rel (0) target = $region21
    $region20: #{tpu_custom_call.1} parent=1 // pred_region
      _
    $region21: #{tpu_custom_call.1} parent=1 // pred_fallthru
      _
    // Predicated region
    $region22: #{tpu_custom_call.1} parent=1 // pred_check
      _
    $region23: #{tpu_custom_call.1} parent=1 // pred_check_branch
      %53 = sbr.rel (0) target = $region25
    $region24: #{tpu_custom_call.1} parent=1 // pred_region
      _
    $region25: #{tpu_custom_call.1} parent=1 // pred_fallthru
      _
    // Predicated region
    $region26: #{tpu_custom_call.1} parent=1 // pred_check
      _
    $region27: #{tpu_custom_call.1} parent=1 // pred_check_branch
      %55 = sbr.rel (0) target = $region29
    $region28: #{tpu_custom_call.1} parent=1 // pred_region
      %56 = dma.done [#allocation3], 128
    $region29: #{tpu_custom_call.1} parent=1 // pred_fallthru
      _
    // Predicated region
    $region30: #{tpu_custom_call.1} parent=1 // pred_check
      _
    $region31: #{tpu_custom_call.1} parent=1 // pred_check_branch
      %58 = sbr.rel (0) target = $region33
    $region32: #{tpu_custom_call.1} parent=1 // pred_region
      %59 = dma.done [#allocation6], 512
    $region33: #{tpu_custom_call.1} parent=1 // pred_fallthru
      _
    // Predicated region
    $region34: #{tpu_custom_call.1} parent=1 // pred_check
      _
    $region35: #{tpu_custom_call.1} parent=1 // pred_check_branch
      %61 = sbr.rel (0) target = $region37
    $region36: #{tpu_custom_call.1} parent=1 // pred_region
      %62 = dma.done [#allocation6], 512
    $region37: #{tpu_custom_call.1} parent=1 // pred_fallthru
      _
    %v63 = vld [vmem:[#allocation2] sm:$0xff]
    %v64 = vld [vmem:[#allocation5] sm:$0xff]
    %v65 = vld [vmem:[#allocation5 + $0x8] sm:$0xff]
    %v66 = vld [vmem:[#allocation5 + $0x10] sm:$0xff]
    %v67 = vld [vmem:[#allocation5 + $0x18] sm:$0xff]
    %v68 = vld [vmem:[%s2] sm:$0x1]
    %v70 = vlaneseq
    %v71 = vshrl.u32 %v70, 7
    %v72 = vsub.s32 0, %v71
    %v73 = vrot.slane %v68, %v72
    %vm75 = vcmask 261120
    %v77 = vsel %vm75, %v63, 0
    %79 = vmatprep.subr.mxu0 0.0
    %80 = vmatpush1.msra.mxu0 0.0
    %81 = vmatprep.subr.mxu0 0.0
    %82 = vmatpush1.msra.mxu0 0.0
    %83 = vmatprep.subr.mxu0 0.0
    %84 = vmatpush1.msra.mxu0 0.0
    %85 = vmatprep.subr.mxu0 0.0
    %86 = vmatpush1.msra.mxu0 0.0
    %87 = vmatprep.subr.mxu0 0.0
    %88 = vmatpush1.msra.mxu0 0.0
    %89 = vmatprep.subr.mxu0 0.0
    %90 = vmatpush1.msra.mxu0 0.0
    %91 = vmatprep.subr.mxu0 0.0
    %92 = vmatpush1.msra.mxu0 0.0
    %93 = vmatprep.subr.mxu0 0.0
    %94 = vmatpush1.msra.mxu0 0.0
    %95 = vmatprep.subr.mxu0 0.0
    %96 = vmatpush1.msra.mxu0 0.0
    %97 = vmatprep.subr.mxu0 0.0
    %98 = vmatpush1.msra.mxu0 0.0
    %99 = vmatprep.subr.mxu0 0.0
    %100 = vmatpush1.msra.mxu0 0.0
    %101 = vmatprep.subr.mxu0 0.0
    %102 = vmatpush1.msra.mxu0 0.0
    %103 = vmatprep.subr.mxu0 0.0
    %104 = vmatpush1.msra.mxu0 %v67
    %105 = vmatprep.subr.mxu0 0.0
    %106 = vmatpush1.msra.mxu0 %v66
    %107 = vmatprep.subr.mxu0 0.0
    %108 = vmatpush1.msra.mxu0 %v65
    %109 = vmatprep.subr.mxu0 0.0
    %110 = vmatpush1.msra.mxu0 %v64
    %111 = vmatprep.subr.mxu0 0.0
    %112 = vmatpush2.msra.mxu0 0.0
    %113 = vmatprep.subr.mxu0 0.0
    %114 = vmatpush2.msra.mxu0 0.0
    %115 = vmatprep.subr.mxu0 0.0
    %116 = vmatpush2.msra.mxu0 0.0
    %117 = vmatprep.subr.mxu0 0.0
    %118 = vmatpush2.msra.mxu0 0.0
    %119 = vmatprep.subr.mxu0 0.0
    %120 = vmatpush2.msra.mxu0 0.0
    %121 = vmatprep.subr.mxu0 0.0
    %122 = vmatpush2.msra.mxu0 0.0
    %123 = vmatprep.subr.mxu0 0.0
    %124 = vmatpush2.msra.mxu0 0.0
    %125 = vmatprep.subr.mxu0 0.0
    %126 = vmatpush2.msra.mxu0 0.0
    %127 = vmatprep.subr.mxu0 0.0
    %128 = vmatpush2.msra.mxu0 0.0
    %129 = vmatprep.subr.mxu0 0.0
    %130 = vmatpush2.msra.mxu0 0.0
    %131 = vmatprep.subr.mxu0 0.0
    %132 = vmatpush2.msra.mxu0 0.0
    %133 = vmatprep.subr.mxu0 0.0
    %134 = vmatpush2.msra.mxu0 0.0
    %135 = vmatprep.subr.mxu0 0.0
    %136 = vmatpush2.msra.mxu0 0.0
    %137 = vmatprep.subr.mxu0 0.0
    %138 = vmatpush2.msra.mxu0 0.0
    %139 = vmatprep.subr.mxu0 0.0
    %140 = vmatpush2.msra.mxu0 0.0
    %141 = vmatprep.subr.mxu0 0.0
    %142 = vmatpush2.msra.mxu0 0.0
    %143 = vmatprep.mubr.f32.mxu0 0.0
    %144 = vmatmul.mubr.f32.gmra.mxu0 %v77
    %v145 = vpop.f32.mrf.mxu0
    %v146 = vadd.f32 %v73, %v145
    %v147 = vpop.f32.mrf.mxu0
    %148 = vdwg.mxu0
    %v149 = vmax.f32 %v146, 0.0
    %v150 = vld [vmem:[#allocation7] sm:$0xff]
    %v151 = vld [vmem:[#allocation7 + $0x8] sm:$0xff]
    %v152 = vld [vmem:[#allocation7 + $0x10] sm:$0xff]
    %v153 = vld [vmem:[#allocation7 + $0x18] sm:$0xff]
    %v154 = vld [vmem:[%s4] sm:$0x1]
    %v156 = vlaneseq
    %v157 = vshrl.u32 %v156, 7
    %v158 = vsub.s32 0, %v157
    %v159 = vrot.slane %v154, %v158
    %v162 = vsel %vm75, %v149, 0
    %164 = vmatprep.subr.mxu0 0.0
    %165 = vmatpush1.msra.mxu0 0.0
    %166 = vmatprep.subr.mxu0 0.0
    %167 = vmatpush1.msra.mxu0 0.0
    %168 = vmatprep.subr.mxu0 0.0
    %169 = vmatpush1.msra.mxu0 0.0
    %170 = vmatprep.subr.mxu0 0.0
    %171 = vmatpush1.msra.mxu0 0.0
    %172 = vmatprep.subr.mxu0 0.0
    %173 = vmatpush1.msra.mxu0 0.0
    %174 = vmatprep.subr.mxu0 0.0
    %175 = vmatpush1.msra.mxu0 0.0
    %176 = vmatprep.subr.mxu0 0.0
    %177 = vmatpush1.msra.mxu0 0.0
    %178 = vmatprep.subr.mxu0 0.0
    %179 = vmatpush1.msra.mxu0 0.0
    %180 = vmatprep.subr.mxu0 0.0
    %181 = vmatpush1.msra.mxu0 0.0
    %182 = vmatprep.subr.mxu0 0.0
    %183 = vmatpush1.msra.mxu0 0.0
    %184 = vmatprep.subr.mxu0 0.0
    %185 = vmatpush1.msra.mxu0 0.0
    %186 = vmatprep.subr.mxu0 0.0
    %187 = vmatpush1.msra.mxu0 0.0
    %188 = vmatprep.subr.mxu0 0.0
    %189 = vmatpush1.msra.mxu0 %v153
    %190 = vmatprep.subr.mxu0 0.0
    %191 = vmatpush1.msra.mxu0 %v152
    %192 = vmatprep.subr.mxu0 0.0
    %193 = vmatpush1.msra.mxu0 %v151
    %194 = vmatprep.subr.mxu0 0.0
    %195 = vmatpush1.msra.mxu0 %v150
    %196 = vmatprep.subr.mxu0 0.0
    %197 = vmatpush2.msra.mxu0 0.0
    %198 = vmatprep.subr.mxu0 0.0
    %199 = vmatpush2.msra.mxu0 0.0
    %200 = vmatprep.subr.mxu0 0.0
    %201 = vmatpush2.msra.mxu0 0.0
    %202 = vmatprep.subr.mxu0 0.0
    %203 = vmatpush2.msra.mxu0 0.0
    %204 = vmatprep.subr.mxu0 0.0
    %205 = vmatpush2.msra.mxu0 0.0
    %206 = vmatprep.subr.mxu0 0.0
    %207 = vmatpush2.msra.mxu0 0.0
    %208 = vmatprep.subr.mxu0 0.0
    %209 = vmatpush2.msra.mxu0 0.0
    %210 = vmatprep.subr.mxu0 0.0
    %211 = vmatpush2.msra.mxu0 0.0
    %212 = vmatprep.subr.mxu0 0.0
    %213 = vmatpush2.msra.mxu0 0.0
    %214 = vmatprep.subr.mxu0 0.0
    %215 = vmatpush2.msra.mxu0 0.0
    %216 = vmatprep.subr.mxu0 0.0
    %217 = vmatpush2.msra.mxu0 0.0
    %218 = vmatprep.subr.mxu0 0.0
    %219 = vmatpush2.msra.mxu0 0.0
    %220 = vmatprep.subr.mxu0 0.0
    %221 = vmatpush2.msra.mxu0 0.0
    %222 = vmatprep.subr.mxu0 0.0
    %223 = vmatpush2.msra.mxu0 0.0
    %224 = vmatprep.subr.mxu0 0.0
    %225 = vmatpush2.msra.mxu0 0.0
    %226 = vmatprep.subr.mxu0 0.0
    %227 = vmatpush2.msra.mxu0 0.0
    %228 = vmatprep.mubr.f32.mxu0 0.0
    %229 = vmatmul.mubr.f32.gmra.mxu0 %v162
    %v230 = vpop.f32.mrf.mxu0
    %v231 = vadd.f32 %v159, %v230
    %v232 = vpop.f32.mrf.mxu0
    %233 = vdwg.mxu0
    %v234 = vmax.f32 %v231, 0.0
    %v235 = vld [vmem:[%s5] sm:$0x1]
    %v237 = vlaneseq
    %v238 = vshrl.u32 %v237, 7
    %v239 = vsub.s32 0, %v238
    %v240 = vrot.slane %v235, %v239
    %v242 = vmul.f32 %v234, %v240
    %243 = vxpose.xlu0.b32.start [1/16] %v242, 128
    %244 = vxpose.xlu0.b32.cont [2/16] 0.0, 128
    %245 = vxpose.xlu0.b32.cont [3/16] 0.0, 128
    %246 = vxpose.xlu0.b32.cont [4/16] 0.0, 128
    %247 = vxpose.xlu0.b32.cont [5/16] 0.0, 128
    %248 = vxpose.xlu0.b32.cont [6/16] 0.0, 128
    %249 = vxpose.xlu0.b32.cont [7/16] 0.0, 128
    %250 = vxpose.xlu0.b32.cont [8/16] 0.0, 128
    %251 = vxpose.xlu0.b32.cont [9/16] 0.0, 128
    %252 = vxpose.xlu0.b32.cont [10/16] 0.0, 128
    %253 = vxpose.xlu0.b32.cont [11/16] 0.0, 128
    %254 = vxpose.xlu0.b32.cont [12/16] 0.0, 128
    %255 = vxpose.xlu0.b32.cont [13/16] 0.0, 128
    %256 = vxpose.xlu0.b32.cont [14/16] 0.0, 128
    %257 = vxpose.xlu0.b32.cont [15/16] 0.0, 128
    %258 = vxpose.xlu0.b32.end [16/16] 0.0, 128
    %v259 = vpop.trf.xlu0
    %v260 = vpop.trf.xlu0
    %v261 = vpop.trf.xlu0
    %v262 = vpop.trf.xlu0
    %v263 = vpop.trf.xlu0
    %v264 = vpop.trf.xlu0
    %v265 = vpop.trf.xlu0
    %v266 = vpop.trf.xlu0
    %v267 = vpop.trf.xlu0
    %v268 = vpop.trf.xlu0
    %v269 = vpop.trf.xlu0
    %v270 = vpop.trf.xlu0
    %v271 = vpop.trf.xlu0
    %v272 = vpop.trf.xlu0
    %v273 = vpop.trf.xlu0
    %v274 = vpop.trf.xlu0
    %vm275 = vcmask 64512
    %v276 = vsel %vm275, %v259, 0.0
    %v277 = vsel %vm275, %v260, 0.0
    %v278 = vadd.f32 %v276, %v277
    %v279 = vsel %vm275, %v261, 0.0
    %v280 = vadd.f32 %v278, %v279
    %v281 = vsel %vm275, %v262, 0.0
    %v282 = vadd.f32 %v280, %v281
    %v283 = vrot.slane %v282, 4
    %v284 = vadd.f32 %v282, %v283
    %v285 = vrot.slane %v284, 2
    %v286 = vadd.f32 %v284, %v285
    %v287 = vrot.slane %v286, 1
    %v288 = vadd.f32 %v286, %v287
    %vm289 = vcmask 57344
    %290 = vst.msk [vmem:[#allocation8] sm:$0x1] %vm289, %v288
    // Predicated region
    $region38: #{tpu_custom_call.1} parent=1 // pred_check
      _
    $region39: #{tpu_custom_call.1} parent=1 // pred_check_branch
      %292 = sbr.rel (0) target = $region41
    $region40: #{tpu_custom_call.1} parent=1 // pred_region
      %s294 = ssub.s32 16, 16
      %295 = vsyncadd [#allocation4], %s294
      %s297 = sshll.u32 [#allocation8], 4
      %s298 = int_to_ptr.vmem [resolvable:$true] %s297
      %300 = dma.vmem_to_hbm [thread:$0]  %s298, 16, %s6, [#allocation4]
    $region41: #{tpu_custom_call.1} parent=1 // pred_fallthru
      _
    // Predicated region
    $region42: #{tpu_custom_call.1} parent=1 // pred_check
      _
    $region43: #{tpu_custom_call.1} parent=1 // pred_check_branch
      %302 = sbr.rel (0) target = $region45
    $region44: #{tpu_custom_call.1} parent=1 // pred_region
      %303 = dma.done [#allocation4], 16
    $region45: #{tpu_custom_call.1} parent=1 // pred_fallthru
      _
    %304 = vsyncpa [#allocation3], 1
    %305 = vsyncpa [#allocation6], 1
    %306 = vsyncpa [#allocation4], 1

</llo_original>
